<compile_context>
chip_gen: v5e
topology: v5e:2x2
jax: 0.10.0
libtpu: 0.0.40
codegen_flags: <defaults>
</compile_context>

<pallas_src>
import functools

import jax
import jax.numpy as jnp
import numpy as np
from jax import lax
from jax.experimental import pallas as pl
from jax.experimental.pallas import tpu as pltpu


def _resblock_kernel(x_ref, w1_ref, b1_ref, w2_ref, b2_ref, w3_ref, b3_ref, o_ref):
    # x_ref: (Bblk, C, L)   w1: (F, C)   w2: (F, 3F) fused taps   w3: (C, F)
    # b1, b2: (F, 1)        b3: (C, 1)   o_ref: (Bblk, C, L)
    bblk, _, L = x_ref.shape
    mxu_dtype = w1_ref.dtype

    w1 = w1_ref[...]
    w2 = w2_ref[...]
    w3 = w3_ref[...]
    b1 = b1_ref[...]
    b2 = b2_ref[...]
    b3 = b3_ref[...]

    # Lane masks for the padding=1 boundaries (computed once per grid step,
    # broadcast over the F rows -> one VPU multiply per shifted tap).
    lane = lax.broadcasted_iota(jnp.int32, (1, L), 1)
    mask_prev = (lane >= 1).astype(jnp.float32)       # zero the wrapped l=0 column
    mask_next = (lane <= L - 2).astype(jnp.float32)   # zero the wrapped l=L-1 column

    for b in range(bblk):  # static, unrolled over the batch block
        x = x_ref[b].astype(jnp.float32)                               # (C, L)

        # conv1 (k=1) + ReLU:  (F, C) @ (C, L) -> (F, L)
        h1 = jnp.dot(w1, x.astype(mxu_dtype),
                     preferred_element_type=jnp.float32) + b1
        h1 = jnp.maximum(h1, 0.0)

        # conv2 (k=3, pad=1) + ReLU as ONE fused matmul:
        # stack [h1[:, l-1]; h1[:, l]; h1[:, l+1]] along the contraction axis.
        h_prev = jnp.roll(h1, 1, axis=1) * mask_prev                   # lane shift
        h_next = jnp.roll(h1, -1, axis=1) * mask_next
        h_stack = jnp.concatenate([h_prev, h1, h_next], axis=0)        # (3F, L)
        h2 = jnp.dot(w2, h_stack.astype(mxu_dtype),
                     preferred_element_type=jnp.float32) + b2
        h2 = jnp.maximum(h2, 0.0)

        # conv3 (k=1), no activation:  (C, F) @ (F, L) -> (C, L)
        out = jnp.dot(w3, h2.astype(mxu_dtype),
                      preferred_element_type=jnp.float32) + b3
        o_ref[b] = out.astype(o_ref.dtype)                             # lane-dense store


def _choose_block_batch(N, C, F, L):
    """Batch items per grid step: fit a modest VMEM budget, keep >= 2 grid steps."""
    per_item_bytes = 4 * L * (2 * C + 5 * F)       # x, out, h1, h2, (3F,L) stack in f32
    budget = 2 * 1024 * 1024                       # conservative even for v7x's 64 MiB VMEM
    bblk = max(1, min(N, budget // max(per_item_bytes, 1)))
    if N >= 2:
        bblk = max(1, min(bblk, N // 2))           # >= 2 steps so both v7x TCs get work
    while N % bblk:                                # even-sized blocks only
        bblk -= 1
    return bblk


@functools.partial(jax.jit, static_argnames=("mxu_dtype",))
def simple_residual_block(x_ncl, w1, b1, w2, b2, w3, b3, *, mxu_dtype=jnp.float32):
    """x_ncl: (N, C_in, L).  Weights use PyTorch Conv1d conventions:
    w1 (F, C_in, 1), w2 (F, F, 3), w3 (C_in, F, 1); biases 1-D.
    Set mxu_dtype=jnp.bfloat16 on v6e/v7x for bf16 MXU operands (f32 accumulation)."""
    N, C_in, L = x_ncl.shape
    F = w1.shape[0]
    bblk = _choose_block_batch(N, C_in, F, L)

    # Weight re-layout so the kernel only does plain W @ X matmuls.
    w1m = w1[:, :, 0].astype(mxu_dtype)                                  # (F, C_in)
    # Fused k=3 weight: W2m[f, k*F + c] = w2[f, c, k] -- matches the (3F, L) tap stack.
    w2m = jnp.transpose(w2, (0, 2, 1)).reshape(F, 3 * F).astype(mxu_dtype)
    w3m = w3[:, :, 0].astype(mxu_dtype)                                  # (C_in, F)
    b1r = b1.reshape(F, 1).astype(jnp.float32)
    b2r = b2.reshape(F, 1).astype(jnp.float32)
    b3r = b3.reshape(C_in, 1).astype(jnp.float32)

    flops = 2 * N * L * (C_in * F + 3 * F * F + F * C_in)
    bytes_accessed = (
        2 * N * C_in * L * x_ncl.dtype.itemsize
        + (w1m.size + w2m.size + w3m.size) * jnp.dtype(mxu_dtype).itemsize
        + (b1r.size + b2r.size + b3r.size) * 4
    )

    return pl.pallas_call(
        _resblock_kernel,
        out_shape=jax.ShapeDtypeStruct((N, C_in, L), x_ncl.dtype),
        grid_spec=pltpu.PrefetchScalarGridSpec(
            num_scalar_prefetch=0,
            grid=(N // bblk,),
            in_specs=[
                pl.BlockSpec((bblk, C_in, L), lambda i: (i, 0, 0)),
                pl.BlockSpec((F, C_in), lambda i: (0, 0)),
                pl.BlockSpec((F, 1), lambda i: (0, 0)),
                pl.BlockSpec((F, 3 * F), lambda i: (0, 0)),
                pl.BlockSpec((F, 1), lambda i: (0, 0)),
                pl.BlockSpec((C_in, F), lambda i: (0, 0)),
                pl.BlockSpec((C_in, 1), lambda i: (0, 0)),
            ],
            out_specs=pl.BlockSpec((bblk, C_in, L), lambda i: (i, 0, 0)),
        ),
        compiler_params=pltpu.CompilerParams(
            dimension_semantics=("parallel",),
            vmem_limit_bytes=32 * 1024 * 1024,
        ),
        cost_estimate=pl.CostEstimate(
            flops=flops, transcendentals=0, bytes_accessed=bytes_accessed),
    )(x_ncl, w1m, b1r, w2m, b2r, w3m, b3r)


def _reference(x_ncl, w1, b1, w2, b2, w3, b3):
    """Pure-JAX reference using lax.conv_general_dilated (NCL / OIL)."""
    dn = ("NCH", "OIH", "NCH")
    y = lax.conv_general_dilated(x_ncl, w1, (1,), "VALID", dimension_numbers=dn)
    y = jnp.maximum(y + b1[None, :, None], 0.0)
    y = lax.conv_general_dilated(y, w2, (1,), [(1, 1)], dimension_numbers=dn)
    y = jnp.maximum(y + b2[None, :, None], 0.0)
    y = lax.conv_general_dilated(y, w3, (1,), "VALID", dimension_numbers=dn)
    return y + b3[None, :, None]


if __name__ == "__main__":
    N, C_in, F, L = 2, 4, 8, 16
    key = jax.random.PRNGKey(0)
    ks = jax.random.split(key, 7)

    x = jax.random.normal(ks[0], (N, C_in, L), dtype=jnp.float32)
    # Deterministic, PyTorch-like uniform init (bound = 1/sqrt(fan_in * k)).
    w1 = jax.random.uniform(ks[1], (F, C_in, 1), minval=-0.5, maxval=0.5, dtype=jnp.float32)
    b1 = jax.random.uniform(ks[2], (F,), minval=-0.5, maxval=0.5, dtype=jnp.float32)
    w2 = jax.random.uniform(ks[3], (F, F, 3), minval=-0.2, maxval=0.2, dtype=jnp.float32)
    b2 = jax.random.uniform(ks[4], (F,), minval=-0.2, maxval=0.2, dtype=jnp.float32)
    w3 = jax.random.uniform(ks[5], (C_in, F, 1), minval=-0.35, maxval=0.35, dtype=jnp.float32)
    b3 = jax.random.uniform(ks[6], (C_in,), minval=-0.35, maxval=0.35, dtype=jnp.float32)

    out = simple_residual_block(x, w1, b1, w2, b2, w3, b3)
    out = jax.block_until_ready(out)

    ref = _reference(x, w1, b1, w2, b2, w3, b3)
    np.testing.assert_allclose(np.asarray(out), np.asarray(ref), rtol=1e-5, atol=1e-5)

    print("KERNEL_OK")
</pallas_src>

<mosaic_0001>
module attributes {stable_mosaic.version = 11 : i64} {
  func.func @_resblock_kernel(%arg0: i32, %arg1: memref<1x4x16xf32, #tpu.memory_space<vmem>>, %arg2: memref<8x4xf32, #tpu.memory_space<vmem>>, %arg3: memref<8x1xf32, #tpu.memory_space<vmem>>, %arg4: memref<8x24xf32, #tpu.memory_space<vmem>>, %arg5: memref<8x1xf32, #tpu.memory_space<vmem>>, %arg6: memref<4x8xf32, #tpu.memory_space<vmem>>, %arg7: memref<4x1xf32, #tpu.memory_space<vmem>>, %arg8: memref<1x4x16xf32, #tpu.memory_space<vmem>>) attributes {dimension_semantics = [#tpu.dimension_semantics<parallel>], iteration_bounds = array<i64: 2>, scalar_prefetch = 0 : i64, scratch_operands = 0 : i64, tpu.core_type = #tpu.core_type<tc>, window_params = [{transform_indices = @transform_0, window_bounds = array<i64: 1, 4, 16>}, {pipeline_mode = #tpu.pipeline_mode<synchronous>, transform_indices = @transform_1, window_bounds = array<i64: 8, 4>}, {pipeline_mode = #tpu.pipeline_mode<synchronous>, transform_indices = @transform_2, window_bounds = array<i64: 8, 1>}, {pipeline_mode = #tpu.pipeline_mode<synchronous>, transform_indices = @transform_3, window_bounds = array<i64: 8, 24>}, {pipeline_mode = #tpu.pipeline_mode<synchronous>, transform_indices = @transform_4, window_bounds = array<i64: 8, 1>}, {pipeline_mode = #tpu.pipeline_mode<synchronous>, transform_indices = @transform_5, window_bounds = array<i64: 4, 8>}, {pipeline_mode = #tpu.pipeline_mode<synchronous>, transform_indices = @transform_6, window_bounds = array<i64: 4, 1>}, {transform_indices = @transform_7, window_bounds = array<i64: 1, 4, 16>}]} {
    %c0 = arith.constant 0 : index
    %c0_0 = arith.constant 0 : index
    %0 = vector.load %arg2[%c0, %c0_0] : memref<8x4xf32, #tpu.memory_space<vmem>>, vector<8x4xf32>
    %c0_1 = arith.constant 0 : index
    %c0_2 = arith.constant 0 : index
    %1 = vector.load %arg4[%c0_1, %c0_2] : memref<8x24xf32, #tpu.memory_space<vmem>>, vector<8x24xf32>
    %c0_3 = arith.constant 0 : index
    %c0_4 = arith.constant 0 : index
    %2 = vector.load %arg6[%c0_3, %c0_4] : memref<4x8xf32, #tpu.memory_space<vmem>>, vector<4x8xf32>
    %c0_5 = arith.constant 0 : index
    %c0_6 = arith.constant 0 : index
    %3 = vector.load %arg3[%c0_5, %c0_6] : memref<8x1xf32, #tpu.memory_space<vmem>>, vector<8x1xf32>
    %c0_7 = arith.constant 0 : index
    %c0_8 = arith.constant 0 : index
    %4 = vector.load %arg5[%c0_7, %c0_8] : memref<8x1xf32, #tpu.memory_space<vmem>>, vector<8x1xf32>
    %c0_9 = arith.constant 0 : index
    %c0_10 = arith.constant 0 : index
    %5 = vector.load %arg7[%c0_9, %c0_10] : memref<4x1xf32, #tpu.memory_space<vmem>>, vector<4x1xf32>
    %6 = tpu.iota {dimensions = array<i32: 1>} : vector<1x16xi32>
    %c1_i32 = arith.constant 1 : i32
    %7 = vector.broadcast %c1_i32 : i32 to vector<1x16xi32>
    %8 = arith.cmpi sge, %6, %7 : vector<1x16xi32>
    %9 = arith.extui %8 : vector<1x16xi1> to vector<1x16xi32>
    %10 = arith.sitofp %9 : vector<1x16xi32> to vector<1x16xf32>
    %c14_i32 = arith.constant 14 : i32
    %11 = vector.broadcast %c14_i32 : i32 to vector<1x16xi32>
    %12 = arith.cmpi sle, %6, %11 : vector<1x16xi32>
    %13 = arith.extui %12 : vector<1x16xi1> to vector<1x16xi32>
    %14 = arith.sitofp %13 : vector<1x16xi32> to vector<1x16xf32>
    %c0_11 = arith.constant 0 : index
    %c0_12 = arith.constant 0 : index
    %c0_13 = arith.constant 0 : index
    %15 = vector.load %arg1[%c0_11, %c0_12, %c0_13] : memref<1x4x16xf32, #tpu.memory_space<vmem>>, vector<1x4x16xf32>
    %16 = vector.shape_cast %15 : vector<1x4x16xf32> to vector<4x16xf32>
    %cst = arith.constant dense<0.000000e+00> : vector<8x16xf32>
    %17 = tpu.matmul %0, %16, %cst {dimension_numbers = #tpu.dot_dimension_numbers<[1], [0], [0], [1], [0, 0, 1, 1], [], []>} : vector<8x4xf32>, vector<4x16xf32>, vector<8x16xf32> -> vector<8x16xf32>
    %18 = vector.broadcast %3 : vector<8x1xf32> to vector<8x16xf32>
    %19 = arith.addf %17, %18 : vector<8x16xf32>
    %cst_14 = arith.constant 0.000000e+00 : f32
    %20 = vector.broadcast %cst_14 : f32 to vector<8x16xf32>
    %21 = arith.maximumf %19, %20 : vector<8x16xf32>
    %22 = vector.extract_strided_slice %21 {offsets = [0, 15], sizes = [8, 1], strides = [1, 1]} : vector<8x16xf32> to vector<8x1xf32>
    %23 = vector.extract_strided_slice %21 {offsets = [0, 0], sizes = [8, 15], strides = [1, 1]} : vector<8x16xf32> to vector<8x15xf32>
    %24 = tpu.concatenate %22, %23 in 1 : vector<8x1xf32>, vector<8x15xf32> -> vector<8x16xf32>
    %25 = vector.broadcast %10 : vector<1x16xf32> to vector<8x16xf32>
    %26 = arith.mulf %24, %25 : vector<8x16xf32>
    %27 = vector.extract_strided_slice %21 {offsets = [0, 1], sizes = [8, 15], strides = [1, 1]} : vector<8x16xf32> to vector<8x15xf32>
    %28 = vector.extract_strided_slice %21 {offsets = [0, 0], sizes = [8, 1], strides = [1, 1]} : vector<8x16xf32> to vector<8x1xf32>
    %29 = tpu.concatenate %27, %28 in 1 : vector<8x15xf32>, vector<8x1xf32> -> vector<8x16xf32>
    %30 = vector.broadcast %14 : vector<1x16xf32> to vector<8x16xf32>
    %31 = arith.mulf %29, %30 : vector<8x16xf32>
    %32 = tpu.concatenate %26, %21, %31 in 0 : vector<8x16xf32>, vector<8x16xf32>, vector<8x16xf32> -> vector<24x16xf32>
    %cst_15 = arith.constant dense<0.000000e+00> : vector<8x16xf32>
    %33 = tpu.matmul %1, %32, %cst_15 {dimension_numbers = #tpu.dot_dimension_numbers<[1], [0], [0], [1], [0, 0, 1, 1], [], []>} : vector<8x24xf32>, vector<24x16xf32>, vector<8x16xf32> -> vector<8x16xf32>
    %34 = vector.broadcast %4 : vector<8x1xf32> to vector<8x16xf32>
    %35 = arith.addf %33, %34 : vector<8x16xf32>
    %cst_16 = arith.constant 0.000000e+00 : f32
    %36 = vector.broadcast %cst_16 : f32 to vector<8x16xf32>
    %37 = arith.maximumf %35, %36 : vector<8x16xf32>
    %cst_17 = arith.constant dense<0.000000e+00> : vector<4x16xf32>
    %38 = tpu.matmul %2, %37, %cst_17 {dimension_numbers = #tpu.dot_dimension_numbers<[1], [0], [0], [1], [0, 0, 1, 1], [], []>} : vector<4x8xf32>, vector<8x16xf32>, vector<4x16xf32> -> vector<4x16xf32>
    %39 = vector.broadcast %5 : vector<4x1xf32> to vector<4x16xf32>
    %40 = arith.addf %38, %39 : vector<4x16xf32>
    %c0_18 = arith.constant 0 : index
    %c0_19 = arith.constant 0 : index
    %c0_20 = arith.constant 0 : index
    %41 = vector.load %arg8[%c0_18, %c0_19, %c0_20] : memref<1x4x16xf32, #tpu.memory_space<vmem>>, vector<1x4x16xf32>
    %42 = vector.shape_cast %41 : vector<1x4x16xf32> to vector<4x16xf32>
    %43 = vector.shape_cast %40 : vector<4x16xf32> to vector<1x4x16xf32>
    tpu.vector_store %arg8[%c0_18, %c0_19, %c0_20], %43 {strides = array<i32>} : memref<1x4x16xf32, #tpu.memory_space<vmem>>, vector<1x4x16xf32>,
    return
  }
  func.func @transform_0(%arg0: i32) -> (i32, i32, i32) {
    %c0_i32 = arith.constant 0 : i32
    %c0_i32_0 = arith.constant 0 : i32
    %c0_i32_1 = arith.constant 0 : i32
    return %arg0, %c0_i32, %c0_i32_0 : i32, i32, i32
  }
  func.func @transform_1(%arg0: i32) -> (i32, i32) {
    %c0_i32 = arith.constant 0 : i32
    %c0_i32_0 = arith.constant 0 : i32
    %c0_i32_1 = arith.constant 0 : i32
    return %c0_i32, %c0_i32_0 : i32, i32
  }
  func.func @transform_2(%arg0: i32) -> (i32, i32) {
    %c0_i32 = arith.constant 0 : i32
    %c0_i32_0 = arith.constant 0 : i32
    %c0_i32_1 = arith.constant 0 : i32
    return %c0_i32, %c0_i32_0 : i32, i32
  }
  func.func @transform_3(%arg0: i32) -> (i32, i32) {
    %c0_i32 = arith.constant 0 : i32
    %c0_i32_0 = arith.constant 0 : i32
    %c0_i32_1 = arith.constant 0 : i32
    return %c0_i32, %c0_i32_0 : i32, i32
  }
  func.func @transform_4(%arg0: i32) -> (i32, i32) {
    %c0_i32 = arith.constant 0 : i32
    %c0_i32_0 = arith.constant 0 : i32
    %c0_i32_1 = arith.constant 0 : i32
    return %c0_i32, %c0_i32_0 : i32, i32
  }
  func.func @transform_5(%arg0: i32) -> (i32, i32) {
    %c0_i32 = arith.constant 0 : i32
    %c0_i32_0 = arith.constant 0 : i32
    %c0_i32_1 = arith.constant 0 : i32
    return %c0_i32, %c0_i32_0 : i32, i32
  }
  func.func @transform_6(%arg0: i32) -> (i32, i32) {
    %c0_i32 = arith.constant 0 : i32
    %c0_i32_0 = arith.constant 0 : i32
    %c0_i32_1 = arith.constant 0 : i32
    return %c0_i32, %c0_i32_0 : i32, i32
  }
  func.func @transform_7(%arg0: i32) -> (i32, i32, i32) {
    %c0_i32 = arith.constant 0 : i32
    %c0_i32_0 = arith.constant 0 : i32
    %c0_i32_1 = arith.constant 0 : i32
    return %arg0, %c0_i32, %c0_i32_0 : i32, i32, i32
  }
}

</mosaic_0001>

<llo_original>
// kernel: simple_residual_block.1
$region0: #{simple_residual_block.1}
  #allocation0 [shape = 'u32[]', space=smem, size = 0x4, offset = 0x4, fixed_abs, tag = 'smem constant byte address 0x4 - core index']
  #allocation1 [shape = 'u32[72,128]{1,0:T(1,128)}', space=vmem, size = 0x9000, scoped, tag = 'internal scratch']
  %s0 = inlined_call_operand.vmem [shape: f32[2,4,16], index: 0, kind: input, shape index: {}]
  %s1 = inlined_call_operand.vmem [shape: f32[8,4], index: 1, kind: input, shape index: {}]
  %s2 = inlined_call_operand.vmem [shape: f32[8,1], index: 2, kind: input, shape index: {}]
  %s3 = inlined_call_operand.vmem [shape: f32[8,24], index: 3, kind: input, shape index: {}]
  %s4 = inlined_call_operand.vmem [shape: f32[8,1], index: 4, kind: input, shape index: {}]
  %s5 = inlined_call_operand.vmem [shape: f32[4,8], index: 5, kind: input, shape index: {}]
  %s6 = inlined_call_operand.vmem [shape: f32[4,1], index: 6, kind: input, shape index: {}]
  %s7 = inlined_call_operand.hbm [shape: f32[2,4,16], index: 7, kind: output, shape index: {}]
  %s8 = sld [smem:[#allocation0]]
  $region61: #{simple_residual_block.1} parent=0
    _
  %s10 = ssub.s32 1, %s8
  %s11 = scalar_select 0, %s10, %s8
  $region1: #{simple_residual_block.1} parent=0
    #allocation2 [shape = 'u8[4096]{0}', space=vmem, size = 0x1000, scoped, tag = 'output window, operand 0']
    #allocation3 [shape = 's32[2]{0}', space=sflag, size = 0x8, scoped, tag = 'scoped memory for simple_residual_block.1']
    %12 = vsyncpa [#allocation3], 0
    %s13 = scalar_lea.sflag [#allocation3], 1
    %14 = vsyncpa %s13, 0
    loop: start=0, step=1, limit=4
    $region2: #{simple_residual_block.1} parent=1 // loop_pre_header
      _
    $region3: #{simple_residual_block.1} parent=1 // loop_header
      %s16 = sphi 0, %s20
      %p17 = scmp.ge.s32.totalorder %s16, 4
      %s26 = sphi 0, %s28
      %s29 = sphi 0, %s26
      %s30 = sphi 0, %s29
      %s46 = sphi 0, %s30
      %s50 = sphi 0, %s50
      %s52 = sphi 0, %s50
      %s53 = sphi 0, %s52
      %s67 = sphi 0, %s53
      %s71 = sphi 0, %s71
      %s73 = sphi 0, %s71
      %s74 = sphi 0, %s73
      %s88 = sphi 0, %s74
      %s92 = sphi 0, %s92
      %s94 = sphi 0, %s92
      %s95 = sphi 0, %s94
      %s109 = sphi 0, %s95
      %s113 = sphi 0, %s113
      %s115 = sphi 0, %s113
      %s116 = sphi 0, %s115
      %s130 = sphi 0, %s116
      %s134 = sphi 0, %s134
      %s136 = sphi 0, %s134
      %s137 = sphi 0, %s136
      %s151 = sphi 0, %s137
      %s155 = sphi 0, %s155
      %s157 = sphi 0, %s155
      %s158 = sphi 0, %s157
      %s172 = sphi 0, %s158
      %s178 = sphi 0, %s180
      %s181 = sphi 0, %s178
      %s182 = sphi 0, %s181
      %s198 = sphi 0, %s182
    $region4: #{simple_residual_block.1} parent=1 // loop_header_branch
      %19 = sbr.rel (%p17) target = $region8
    $region5: #{simple_residual_block.1} parent=1 // loop_body
      %s21 = ssub.s32 %s16, 1
      %s22 = ssub.s32 %s16, 2
      %s23 = sadd.s32 %s16, 1
      %s24 = ssub.s32 %s16, %s23
      %p25 = scmp.eq.s32.totalorder %s24, 0
      %s27 = sadd.s32 %s26, 1
      %s28 = scalar_select %p25, %s26, %s27
      %p31 = pneg %p25
      %p32 = scmp.eq.s32.totalorder %s16, 1
      %p33 = por %p31, %p32
      %p34 = scmp.ne.s32.totalorder %s26, %s29
      %p35 = scmp.eq.s32.totalorder %s16, 0
      %p36 = por %p34, %p35
      %p37 = scmp.ne.s32.totalorder %s26, %s29
      %p38 = scmp.eq.s32.totalorder %s21, 1
      %p39 = por %p37, %p38
      %p40 = scmp.ne.s32.totalorder %s29, %s30
      %p41 = scmp.eq.s32.totalorder %s21, 0
      %p42 = por %p40, %p41
      %p43 = scmp.ne.s32.totalorder %s29, %s30
      %p44 = scmp.eq.s32.totalorder %s22, 1
      %p45 = por %p43, %p44
      %p47 = scmp.ne.s32.totalorder %s30, %s46
      %p48 = scmp.eq.s32.totalorder %s22, 0
      %p49 = por %p47, %p48
      %s51 = sadd.s32 %s50, 1
      %p54 = scmp.eq.s32.totalorder %s16, 1
      %p55 = scmp.ne.s32.totalorder %s50, %s52
      %p56 = scmp.eq.s32.totalorder %s16, 0
      %p57 = por %p55, %p56
      %p58 = scmp.ne.s32.totalorder %s50, %s52
      %p59 = scmp.eq.s32.totalorder %s21, 1
      %p60 = por %p58, %p59
      %p61 = scmp.ne.s32.totalorder %s52, %s53
      %p62 = scmp.eq.s32.totalorder %s21, 0
      %p63 = por %p61, %p62
      %p64 = scmp.ne.s32.totalorder %s52, %s53
      %p65 = scmp.eq.s32.totalorder %s22, 1
      %p66 = por %p64, %p65
      %p68 = scmp.ne.s32.totalorder %s53, %s67
      %p69 = scmp.eq.s32.totalorder %s22, 0
      %p70 = por %p68, %p69
      %s72 = sadd.s32 %s71, 1
      %p75 = scmp.eq.s32.totalorder %s16, 1
      %p76 = scmp.ne.s32.totalorder %s71, %s73
      %p77 = scmp.eq.s32.totalorder %s16, 0
      %p78 = por %p76, %p77
      %p79 = scmp.ne.s32.totalorder %s71, %s73
      %p80 = scmp.eq.s32.totalorder %s21, 1
      %p81 = por %p79, %p80
      %p82 = scmp.ne.s32.totalorder %s73, %s74
      %p83 = scmp.eq.s32.totalorder %s21, 0
      %p84 = por %p82, %p83
      %p85 = scmp.ne.s32.totalorder %s73, %s74
      %p86 = scmp.eq.s32.totalorder %s22, 1
      %p87 = por %p85, %p86
      %p89 = scmp.ne.s32.totalorder %s74, %s88
      %p90 = scmp.eq.s32.totalorder %s22, 0
      %p91 = por %p89, %p90
      %s93 = sadd.s32 %s92, 1
      %p96 = scmp.eq.s32.totalorder %s16, 1
      %p97 = scmp.ne.s32.totalorder %s92, %s94
      %p98 = scmp.eq.s32.totalorder %s16, 0
      %p99 = por %p97, %p98
      %p100 = scmp.ne.s32.totalorder %s92, %s94
      %p101 = scmp.eq.s32.totalorder %s21, 1
      %p102 = por %p100, %p101
      %p103 = scmp.ne.s32.totalorder %s94, %s95
      %p104 = scmp.eq.s32.totalorder %s21, 0
      %p105 = por %p103, %p104
      %p106 = scmp.ne.s32.totalorder %s94, %s95
      %p107 = scmp.eq.s32.totalorder %s22, 1
      %p108 = por %p106, %p107
      %p110 = scmp.ne.s32.totalorder %s95, %s109
      %p111 = scmp.eq.s32.totalorder %s22, 0
      %p112 = por %p110, %p111
      %s114 = sadd.s32 %s113, 1
      %p117 = scmp.eq.s32.totalorder %s16, 1
      %p118 = scmp.ne.s32.totalorder %s113, %s115
      %p119 = scmp.eq.s32.totalorder %s16, 0
      %p120 = por %p118, %p119
      %p121 = scmp.ne.s32.totalorder %s113, %s115
      %p122 = scmp.eq.s32.totalorder %s21, 1
      %p123 = por %p121, %p122
      %p124 = scmp.ne.s32.totalorder %s115, %s116
      %p125 = scmp.eq.s32.totalorder %s21, 0
      %p126 = por %p124, %p125
      %p127 = scmp.ne.s32.totalorder %s115, %s116
      %p128 = scmp.eq.s32.totalorder %s22, 1
      %p129 = por %p127, %p128
      %p131 = scmp.ne.s32.totalorder %s116, %s130
      %p132 = scmp.eq.s32.totalorder %s22, 0
      %p133 = por %p131, %p132
      %s135 = sadd.s32 %s134, 1
      %p138 = scmp.eq.s32.totalorder %s16, 1
      %p139 = scmp.ne.s32.totalorder %s134, %s136
      %p140 = scmp.eq.s32.totalorder %s16, 0
      %p141 = por %p139, %p140
      %p142 = scmp.ne.s32.totalorder %s134, %s136
      %p143 = scmp.eq.s32.totalorder %s21, 1
      %p144 = por %p142, %p143
      %p145 = scmp.ne.s32.totalorder %s136, %s137
      %p146 = scmp.eq.s32.totalorder %s21, 0
      %p147 = por %p145, %p146
      %p148 = scmp.ne.s32.totalorder %s136, %s137
      %p149 = scmp.eq.s32.totalorder %s22, 1
      %p150 = por %p148, %p149
      %p152 = scmp.ne.s32.totalorder %s137, %s151
      %p153 = scmp.eq.s32.totalorder %s22, 0
      %p154 = por %p152, %p153
      %s156 = sadd.s32 %s155, 1
      %p159 = scmp.eq.s32.totalorder %s16, 1
      %p160 = scmp.ne.s32.totalorder %s155, %s157
      %p161 = scmp.eq.s32.totalorder %s16, 0
      %p162 = por %p160, %p161
      %p163 = scmp.ne.s32.totalorder %s155, %s157
      %p164 = scmp.eq.s32.totalorder %s21, 1
      %p165 = por %p163, %p164
      %p166 = scmp.ne.s32.totalorder %s157, %s158
      %p167 = scmp.eq.s32.totalorder %s21, 0
      %p168 = por %p166, %p167
      %p169 = scmp.ne.s32.totalorder %s157, %s158
      %p170 = scmp.eq.s32.totalorder %s22, 1
      %p171 = por %p169, %p170
      %p173 = scmp.ne.s32.totalorder %s158, %s172
      %p174 = scmp.eq.s32.totalorder %s22, 0
      %p175 = por %p173, %p174
      %s176 = ssub.s32 %s16, %s23
      %p177 = scmp.eq.s32.totalorder %s176, 0
      %s179 = sadd.s32 %s178, 1
      %s180 = scalar_select %p177, %s178, %s179
      %p183 = pneg %p177
      %p184 = scmp.eq.s32.totalorder %s16, 1
      %p185 = por %p183, %p184
      %p186 = scmp.ne.s32.totalorder %s178, %s181
      %p187 = scmp.eq.s32.totalorder %s16, 0
      %p188 = por %p186, %p187
      %p189 = scmp.ne.s32.totalorder %s178, %s181
      %p190 = scmp.eq.s32.totalorder %s21, 1
      %p191 = por %p189, %p190
      %p192 = scmp.ne.s32.totalorder %s181, %s182
      %p193 = scmp.eq.s32.totalorder %s21, 0
      %p194 = por %p192, %p193
      %p195 = scmp.ne.s32.totalorder %s181, %s182
      %p196 = scmp.eq.s32.totalorder %s22, 1
      %p197 = por %p195, %p196
      %p199 = scmp.ne.s32.totalorder %s182, %s198
      %p200 = scmp.eq.s32.totalorder %s22, 0
      %p201 = por %p199, %p200
      %p202 = scmp.le.s32.totalorder 1, %s16
      %p203 = scmp.lt.s32.totalorder %s16, 3
      %p204 = pnand %p202, %p203
      %p205 = pneg %p204
      // Predicated region
      $region9: #{simple_residual_block.1} parent=5 // pred_check
        _
      $region10: #{simple_residual_block.1} parent=5 // pred_check_branch
        %207 = sbr.rel (%p204) target = $region12
      $region11: #{simple_residual_block.1} parent=5 // pred_region
        %s208 = ssub.s32 %s16, 1
        // Predicated region
        $region13: #{simple_residual_block.1} parent=11 // pred_check
          %p209 = pneg %p63
        $region14: #{simple_residual_block.1} parent=11 // pred_check_branch
          %211 = sbr.rel (%p209) target = $region16
        $region15: #{simple_residual_block.1} parent=11 // pred_region
          _
        $region16: #{simple_residual_block.1} parent=11 // pred_fallthru
          _
        // Predicated region
        $region17: #{simple_residual_block.1} parent=11 // pred_check
          %p212 = pneg %p84
        $region18: #{simple_residual_block.1} parent=11 // pred_check_branch
          %214 = sbr.rel (%p212) target = $region20
        $region19: #{simple_residual_block.1} parent=11 // pred_region
          _
        $region20: #{simple_residual_block.1} parent=11 // pred_fallthru
          _
        // Predicated region
        $region21: #{simple_residual_block.1} parent=11 // pred_check
          %p215 = pneg %p105
        $region22: #{simple_residual_block.1} parent=11 // pred_check_branch
          %217 = sbr.rel (%p215) target = $region24
        $region23: #{simple_residual_block.1} parent=11 // pred_region
          _
        $region24: #{simple_residual_block.1} parent=11 // pred_fallthru
          _
        // Predicated region
        $region25: #{simple_residual_block.1} parent=11 // pred_check
          %p218 = pneg %p126
        $region26: #{simple_residual_block.1} parent=11 // pred_check_branch
          %220 = sbr.rel (%p218) target = $region28
        $region27: #{simple_residual_block.1} parent=11 // pred_region
          _
        $region28: #{simple_residual_block.1} parent=11 // pred_fallthru
          _
        // Predicated region
        $region29: #{simple_residual_block.1} parent=11 // pred_check
          %p221 = pneg %p147
        $region30: #{simple_residual_block.1} parent=11 // pred_check_branch
          %223 = sbr.rel (%p221) target = $region32
        $region31: #{simple_residual_block.1} parent=11 // pred_region
          _
        $region32: #{simple_residual_block.1} parent=11 // pred_fallthru
          _
        // Predicated region
        $region33: #{simple_residual_block.1} parent=11 // pred_check
          %p224 = pneg %p168
        $region34: #{simple_residual_block.1} parent=11 // pred_check_branch
          %226 = sbr.rel (%p224) target = $region36
        $region35: #{simple_residual_block.1} parent=11 // pred_region
          _
        $region36: #{simple_residual_block.1} parent=11 // pred_fallthru
          _
      $region12: #{simple_residual_block.1} parent=5 // pred_fallthru
        _
      %p227 = scmp.lt.s32.totalorder %s16, 2
      // Predicated region
      $region37: #{simple_residual_block.1} parent=5 // pred_check
        %p228 = pneg %p227
      $region38: #{simple_residual_block.1} parent=5 // pred_check_branch
        %230 = sbr.rel (%p228) target = $region40
      $region39: #{simple_residual_block.1} parent=5 // pred_region
        // Predicated region
        $region41: #{simple_residual_block.1} parent=39 // pred_check
          %p231 = pneg %p36
        $region42: #{simple_residual_block.1} parent=39 // pred_check_branch
          %233 = sbr.rel (%p231) target = $region44
        $region43: #{simple_residual_block.1} parent=39 // pred_region
          %p234 = scmp.lt.s32.totalorder %s16, 1
          %s235 = scalar_select %p234, %s16, 1
          %s236 = smul.addr %s235, 4
          %s237 = scalar_lea.vmem %s0, %s236
        $region44: #{simple_residual_block.1} parent=39 // pred_fallthru
          _
      $region40: #{simple_residual_block.1} parent=5 // pred_fallthru
        _
      %p238 = scmp.le.s32.totalorder 1, %s16
      %p239 = scmp.lt.s32.totalorder %s16, 3
      %p240 = pnand %p238, %p239
      %p241 = pneg %p240
      // Predicated region
      $region45: #{simple_residual_block.1} parent=5 // pred_check
        _
      $region46: #{simple_residual_block.1} parent=5 // pred_check_branch
        %243 = sbr.rel (%p240) target = $region48
      $region47: #{simple_residual_block.1} parent=5 // pred_region
        %s244 = ssub.s32 %s16, 1
        %p245 = scmp.lt.s32.totalorder %s21, 1
        %s246 = scalar_select %p245, %s21, 1
        %s247 = smul.addr %s246, 4
        %s248 = scalar_lea.vmem %s0, %s247
        %p249 = pneg %p42
        %p250 = pneg %p39
        %p251 = pneg %p63
        %p252 = pneg %p60
        %p253 = pneg %p84
        %p254 = pneg %p81
        %p255 = pneg %p105
        %p256 = pneg %p102
        %p257 = pneg %p126
        %p258 = pneg %p123
        %p259 = pneg %p147
        %p260 = pneg %p144
        %p261 = pneg %p168
        %p262 = pneg %p165
        %p263 = pneg %p194
        %p264 = pneg %p191
        %s265 = sand.u32 %s181, 1
        %s266 = scalar_lea.sflag [#allocation3], %s265
        %s267 = sand.u32 %s181, 1
        %s268 = smul.addr %s267, 4
        %s269 = scalar_lea.vmem [#allocation2], %s268
        %p270 = scmp.lt.s32.totalorder %s21, 1
        %s271 = scalar_select %p270, %s21, 1
        %s272 = smul.addr %s271, 4
        %s273 = scalar_lea.vmem %s0, %s272
        %v274 = vld [vmem:[%s1] sm:$0xff]
        %v275 = vld [vmem:[%s3] sm:$0xff]
        %v276 = vld [vmem:[%s5] sm:$0xf]
        %v277 = vld [vmem:[%s2] sm:$0xff]
        %v278 = vld [vmem:[%s4] sm:$0xff]
        %v279 = vld [vmem:[%s6] sm:$0xf]
        %v280 = vlaneseq
        %v281 = vand.u32 %v280, 127
        %vm282 = vcmp.ge.s32.totalorder %v281, 1
        %v283 = vsel %vm282, 1, 0
        %v284 = vcvt.s32.f32 %v283
        %vm285 = vcmp.le.s32.totalorder %v281, 14
        %v286 = vsel %vm285, 1, 0
        %v287 = vcvt.s32.f32 %v286
        %v288 = vld [vmem:[%s273] sm:$0xf]
        %290 = vset.pattern.permute.xlu0 0
        %291 = vperm.xlu0 %290, %v277
        %v292 = vpop.permute.xlu0 %291
        %vm294 = vcmask 31744
        %v296 = vsel %vm294, %v274, 0
        %vm298 = vcmask 1043456
        %v300 = vsel %vm298, %v288, 0
        %302 = vmatpush.msra.mxu0 0.0
        %303 = vmatpush.msra.mxu0 0.0
        %304 = vmatpush.msra.mxu0 0.0
        %305 = vmatpush.msra.mxu0 0.0
        %306 = vmatpush.msra.mxu0 0.0
        %307 = vmatpush.msra.mxu0 0.0
        %308 = vmatpush.msra.mxu0 0.0
        %309 = vmatpush.msra.mxu0 0.0
        %310 = vmatpush.msra.mxu0 0.0
        %311 = vmatpush.msra.mxu0 0.0
        %312 = vmatpush.msra.mxu0 0.0
        %313 = vmatpush.msra.mxu0 0.0
        %314 = vmatpush.msra.mxu0 0.0
        %315 = vmatpush.msra.mxu0 0.0
        %316 = vmatpush.msra.mxu0 0.0
        %317 = vmatpush.msra.mxu0 %v300
        %318 = vmatmul.f32.gmra.mxu0 %v296
        %v319 = vpop.f32.mrf.mxu0
        %v320 = vadd.f32 %v292, %v319
        %321 = vdwg.mxu0
        %v322 = vmax.f32 %v320, 0.0
        %324 = vrot.lane.b32.xlu0 %v322, 113
        %v325 = vpop.permute.xlu0 %324
        %327 = vrot.lane.b32.xlu0 %v322, 1
        %v328 = vpop.permute.xlu0 %327
        %vm330 = vcmask 7168
        %v331 = vsel %vm330, %v325, %v328
        %v332 = vmul.f32 %v331, %v284
        %333 = vrot.lane.b32.xlu0 %v322, 127
        %v334 = vpop.permute.xlu0 %333
        %336 = vrot.lane.b32.xlu0 %v322, 15
        %v337 = vpop.permute.xlu0 %336
        %vm339 = vcmask 121856
        %v340 = vsel %vm339, %v334, %v337
        %v341 = vmul.f32 %v340, %v287
        %343 = vset.pattern.permute.xlu0 0
        %344 = vperm.xlu0 %343, %v278
        %v345 = vpop.permute.xlu0 %344
        %vm347 = vcmask 195584
        %v349 = vsel %vm347, %v275, 0
        %351 = vmatpush.msra.mxu0 0.0
        %352 = vmatpush.msra.mxu0 0.0
        %353 = vmatpush.msra.mxu0 0.0
        %354 = vmatpush.msra.mxu0 0.0
        %355 = vmatpush.msra.mxu0 0.0
        %356 = vmatpush.msra.mxu0 0.0
        %357 = vmatpush.msra.mxu0 0.0
        %358 = vmatpush.msra.mxu0 0.0
        %359 = vmatpush.msra.mxu0 0.0
        %360 = vmatpush.msra.mxu0 0.0
        %361 = vmatpush.msra.mxu0 0.0
        %362 = vmatpush.msra.mxu0 0.0
        %363 = vmatpush.msra.mxu0 0.0
        %364 = vmatpush.msra.mxu0 %v341
        %365 = vmatpush.msra.mxu0 %v322
        %366 = vmatpush.msra.mxu0 %v332
        %367 = vmatmul.f32.gmra.mxu0 %v349
        %v368 = vpop.f32.mrf.mxu0
        %v369 = vadd.f32 %v345, %v368
        %370 = vdwg.mxu0
        %v371 = vmax.f32 %v369, 0.0
        %373 = vset.pattern.permute.xlu0 0
        %374 = vperm.xlu0 %373, %v279
        %v375 = vpop.permute.xlu0 %374
        %vm377 = vcmask 64512
        %v379 = vsel %vm377, %v276, 0
        %381 = vmatpush.msra.mxu0 0.0
        %382 = vmatpush.msra.mxu0 0.0
        %383 = vmatpush.msra.mxu0 0.0
        %384 = vmatpush.msra.mxu0 0.0
        %385 = vmatpush.msra.mxu0 0.0
        %386 = vmatpush.msra.mxu0 0.0
        %387 = vmatpush.msra.mxu0 0.0
        %388 = vmatpush.msra.mxu0 0.0
        %389 = vmatpush.msra.mxu0 0.0
        %390 = vmatpush.msra.mxu0 0.0
        %391 = vmatpush.msra.mxu0 0.0
        %392 = vmatpush.msra.mxu0 0.0
        %393 = vmatpush.msra.mxu0 0.0
        %394 = vmatpush.msra.mxu0 0.0
        %395 = vmatpush.msra.mxu0 0.0
        %396 = vmatpush.msra.mxu0 %v371
        %397 = vmatmul.f32.gmra.mxu0 %v379
        %v398 = vpop.f32.mrf.mxu0
        %v399 = vadd.f32 %v375, %v398
        %400 = vdwg.mxu0
        %vm401 = vcmask 125952
        %402 = vst.msk [vmem:[%s269] sm:$0xf] %vm401, %v399
        %s403 = sand.u32 %s181, 1
        %s404 = scalar_lea.sflag [#allocation3], %s403
        %s405 = sand.u32 %s181, 1
        %s406 = smul.addr %s405, 4
        %s407 = scalar_lea.vmem [#allocation2], %s406
        // Predicated region
        $region49: #{simple_residual_block.1} parent=47 // pred_check
          %p408 = pneg %p191
        $region50: #{simple_residual_block.1} parent=47 // pred_check_branch
          %410 = sbr.rel (%p408) target = $region52
        $region51: #{simple_residual_block.1} parent=47 // pred_region
          %412 = vsyncadd %s404, 0
          %s413 = smul.addr %s21, 4
          %s414 = scalar_lea.hbm %s7, %s413
          %s416 = sshll.u32 %s407, 4
          %s417 = int_to_ptr.vmem [resolvable:$true] %s416
          %s418 = sshll.u32 %s414, 4
          %s419 = int_to_ptr.hbm [resolvable:$true] %s418
          %421 = dma.vmem_to_hbm [thread:$0]  %s417, 64, %s419, %s404
        $region52: #{simple_residual_block.1} parent=47 // pred_fallthru
          _
      $region48: #{simple_residual_block.1} parent=5 // pred_fallthru
        _
      %p422 = scmp.le.s32.totalorder 2, %s16
      // Predicated region
      $region53: #{simple_residual_block.1} parent=5 // pred_check
        %p423 = pneg %p422
      $region54: #{simple_residual_block.1} parent=5 // pred_check_branch
        %425 = sbr.rel (%p423) target = $region56
      $region55: #{simple_residual_block.1} parent=5 // pred_region
        %s426 = ssub.s32 %s16, 2
        // Predicated region
        $region57: #{simple_residual_block.1} parent=55 // pred_check
          %p427 = pneg %p197
        $region58: #{simple_residual_block.1} parent=55 // pred_check_branch
          %429 = sbr.rel (%p427) target = $region60
        $region59: #{simple_residual_block.1} parent=55 // pred_region
          %s430 = sand.u32 %s182, 1
          %s431 = scalar_lea.sflag [#allocation3], %s430
          %s432 = sand.u32 %s182, 1
          %s433 = smul.addr %s432, 4
          %s434 = scalar_lea.vmem [#allocation2], %s433
          %436 = dma.done %s431, 64
        $region60: #{simple_residual_block.1} parent=55 // pred_fallthru
          _
      $region56: #{simple_residual_block.1} parent=5 // pred_fallthru
        _
    $region6: #{simple_residual_block.1} parent=1 // loop_footer
      %s20 = sadd.s32 1, %s16
    $region7: #{simple_residual_block.1} parent=1 // loop_footer_branch
      %15 = sbr.rel target = $region3
    $region8: #{simple_residual_block.1} parent=1 // loop_exit
      _
    %437 = vsyncpa [#allocation3], 1
    %s438 = scalar_lea.sflag [#allocation3], 1
    %439 = vsyncpa %s438, 1

</llo_original>
